<compile_context>
chip_gen: v6e
topology: v6e:2x2x1
jax: 0.10.0
libtpu: 0.0.40
codegen_flags: <defaults>
</compile_context>

<pallas_src>
import functools

import jax
import jax.numpy as jnp
from jax.experimental import pallas as pl
from jax.experimental.pallas import tpu as pltpu


LANE = 128
# Cap on the double-buffered VMEM working set: safe on v7x (64 MiB physical)
# and leaves plenty of headroom on v5e/v6e (128 MiB).
_VMEM_BUDGET = 40 * 1024 * 1024


def _round_up(x: int, m: int) -> int:
    return ((x + m - 1) // m) * m


def _pick_tm(m: int) -> int:
    """Pick an M tile: prefer exact divisors (no padding), else <=~12.5% waste."""
    for c in (512, 256, 128, 64, 32, 16):
        if m % c == 0:
            return c
    for c in (512, 256, 128, 64, 32, 16):
        if _round_up(m, c) <= max(m + 16, (m * 9) // 8):
            return c
    return 16


def _pick_tn(np_: int) -> int:
    for c in (512, 256, 128):
        if np_ % c == 0:
            return c
    return 128


# ---------------------------------------------------------------------------
# Kernels
# ---------------------------------------------------------------------------
def _linear_relu_kernel(x_ref, w_ref, b_ref, o_ref):
    """Full-K path: y_tile = relu(x_tile @ w_slab + b).  No accumulator.

    Grid is (N_tiles, M_tiles) with M innermost, so the [K, tn] weight slab
    keeps the same block index across consecutive steps and is DMA'd once.
    x is cast to bf16 on the loaded block (free when it is already bf16).
    """
    x = x_ref[...].astype(w_ref.dtype)
    acc = jnp.dot(x, w_ref[...], preferred_element_type=jnp.float32)
    o_ref[...] = jnp.maximum(acc + b_ref[...], 0.0).astype(o_ref.dtype)


def _linear_relu_kernel_ktiled(x_ref, w_ref, b_ref, o_ref, acc_ref):
    """K-tiled fallback for very large K: f32 VMEM accumulator, K innermost."""
    k = pl.program_id(2)

    @pl.when(k == 0)
    def _():
        acc_ref[...] = jnp.zeros_like(acc_ref)

    x = x_ref[...].astype(w_ref.dtype)
    acc_ref[...] += jnp.dot(x, w_ref[...], preferred_element_type=jnp.float32)

    @pl.when(k == pl.num_programs(2) - 1)
    def _():
        o_ref[...] = jnp.maximum(acc_ref[...] + b_ref[...], 0.0).astype(o_ref.dtype)


# ---------------------------------------------------------------------------
# Wrapper around pallas_call
# ---------------------------------------------------------------------------
@functools.partial(jax.jit, static_argnames=("n_out",))
def linear_relu_pallas(x2d, wp, bp, n_out):
    """y = relu(x2d @ W + b) with pre-padded/pre-cast params.

    x2d: [M, K] (any float dtype), wp: [Kp, Np] bf16 (zero-padded),
    bp: [1, Np] f32 (zero-padded).  Returns [M, n_out] in x2d.dtype.
    """
    M, K = x2d.shape
    Kp, Np = wp.shape
    assert bp.shape == (1, Np)
    assert K <= Kp

    out_dtype = x2d.dtype
    out_item = jnp.dtype(out_dtype).itemsize
    w_item = wp.dtype.itemsize

    tm = _pick_tm(M)
    Mp = _round_up(M, tm)
    tn = _pick_tn(Np)

    need_pad = (Mp != M) or (Kp != K)
    if need_pad:
        # Single fused pad+cast pass over x, only when the shape requires it.
        xk = jnp.zeros((Mp, Kp), jnp.bfloat16).at[:M, :K].set(
            x2d.astype(jnp.bfloat16))
        x_item = 2
    else:
        # Aligned fast path: no extra HBM round trip; cast happens in-kernel.
        xk = x2d
        x_item = jnp.dtype(x2d.dtype).itemsize

    def full_k_footprint(tm_c, tn_c):
        return (2 * tm_c * Kp * x_item          # x tile, double buffered
                + 2 * Kp * tn_c * w_item        # weight slab, double buffered
                + 2 * tm_c * tn_c * out_item    # output tile, double buffered
                + 2 * tn_c * 4)                 # bias

    # Prefer the accumulator-free full-K path (weight read from HBM once).
    # Shrinking tm there is traffic-neutral, so try smaller tm before giving up.
    cand_tms, c = [], tm
    while c >= 128:
        cand_tms.append(c)
        c //= 2
    if not cand_tms:
        cand_tms = [tm]

    tm_full, fp_full = None, 0
    for c in cand_tms:
        fp = full_k_footprint(c, tn)
        if fp <= _VMEM_BUDGET:
            tm_full, fp_full = c, fp
            break

    if tm_full is not None:
        tm = tm_full
        # Keep both v7x TensorCores busy for degenerate single-tile grids.
        if Mp // tm == 1 and Np // tn == 1 and tn >= 256:
            tn //= 2
        footprint = fp_full
        grid = (Np // tn, Mp // tm)             # weight-column axis outermost
        kernel = _linear_relu_kernel
        grid_spec = pltpu.PrefetchScalarGridSpec(
            num_scalar_prefetch=0,
            grid=grid,
            in_specs=[
                pl.BlockSpec((tm, Kp), lambda j, i: (i, 0)),
                pl.BlockSpec((Kp, tn), lambda j, i: (0, j)),
                pl.BlockSpec((1, tn), lambda j, i: (0, j)),
            ],
            out_specs=pl.BlockSpec((tm, tn), lambda j, i: (i, j)),
            scratch_shapes=[],
        )
        dims = ("parallel", "parallel")
        bytes_accessed = (Mp * Kp * x_item * (Np // tn)
                          + Kp * Np * w_item
                          + Np * 4
                          + Mp * Np * out_item)
    else:
        # Very large K: tile K, accumulate in an f32 VMEM scratch.
        tk = 128
        footprint = 0
        for c in (2048, 1024, 512, 256, 128):
            if Kp % c == 0:
                fp = (2 * tm * c * x_item + 2 * c * tn * w_item
                      + 2 * tm * tn * out_item + tm * tn * 4 + 2 * tn * 4)
                if fp <= _VMEM_BUDGET:
                    tk, footprint = c, fp
                    break
        if footprint == 0:
            footprint = (2 * tm * tk * x_item + 2 * tk * tn * w_item
                         + 2 * tm * tn * out_item + tm * tn * 4 + 2 * tn * 4)
        grid = (Mp // tm, Np // tn, Kp // tk)
        kernel = _linear_relu_kernel_ktiled
        grid_spec = pltpu.PrefetchScalarGridSpec(
            num_scalar_prefetch=0,
            grid=grid,
            in_specs=[
                pl.BlockSpec((tm, tk), lambda i, j, k: (i, k)),
                pl.BlockSpec((tk, tn), lambda i, j, k: (k, j)),
                pl.BlockSpec((1, tn), lambda i, j, k: (0, j)),
            ],
            out_specs=pl.BlockSpec((tm, tn), lambda i, j, k: (i, j)),
            scratch_shapes=[pltpu.VMEM((tm, tn), jnp.float32)],
        )
        dims = ("parallel", "parallel", "arbitrary")
        bytes_accessed = (Mp * Kp * x_item * (Np // tn)
                          + Kp * Np * w_item * (Mp // tm)
                          + Np * 4
                          + Mp * Np * out_item)

    cost = pl.CostEstimate(
        flops=2 * Mp * Kp * Np,
        transcendentals=0,
        bytes_accessed=bytes_accessed,
    )

    out = pl.pallas_call(
        kernel,
        out_shape=jax.ShapeDtypeStruct((Mp, Np), out_dtype),
        grid_spec=grid_spec,
        compiler_params=pltpu.CompilerParams(
            dimension_semantics=dims,
            vmem_limit_bytes=int(
                min(max(footprint + 8 * 1024 * 1024, 32 * 1024 * 1024),
                    56 * 1024 * 1024)),
        ),
        cost_estimate=cost,
    )(xk, wp, bp)

    # Strip padding only if padding was actually added.
    if Mp != M or Np != n_out:
        out = out[:M, :n_out]
    return out


# ---------------------------------------------------------------------------
# Model + wrapper
# ---------------------------------------------------------------------------
def _prep_linear_params(weight, bias):
    """Pad + bf16-cast Linear params once (hoisted out of the per-call path)."""
    K, N = weight.shape
    Kp = _round_up(K, LANE)
    Np = _round_up(N, LANE)
    # Bump N padding to a 256 multiple when cheap so the 256x256-MXU chips
    # (v6e/v7x) never have to fall back to a 128-wide output tile.
    if Np % 256 != 0 and _round_up(Np, 256) - Np <= Np // 8:
        Np = _round_up(Np, 256)
    wp = jnp.zeros((Kp, Np), jnp.bfloat16).at[:K, :N].set(
        weight.astype(jnp.bfloat16))
    bp = jnp.zeros((1, Np), jnp.float32).at[0, :N].set(
        bias.astype(jnp.float32))
    return wp, bp


class SyntheticInnerModel:
    """Deterministic synthetic inner model: Linear(H, H) + ReLU."""

    def __init__(self, hidden: int, key):
        kw, kb = jax.random.split(key)
        bound = 1.0 / (hidden ** 0.5)
        # stored as [in, out] so forward is x @ W + b (== nn.Linear with W.T)
        self.weight = jax.random.uniform(
            kw, (hidden, hidden), jnp.float32, -bound, bound)
        self.bias = jax.random.uniform(
            kb, (hidden,), jnp.float32, -bound, bound)
        self.hidden = hidden
        # Pad + cast ONCE at init; cached for every forward call.
        self.w_prepped, self.b_prepped = _prep_linear_params(
            self.weight, self.bias)
        self.w_prepped = jax.block_until_ready(self.w_prepped)
        self.b_prepped = jax.block_until_ready(self.b_prepped)

    def __call__(self, x):
        # x: [B, S, H] -> flatten leading dims, run Pallas kernel, restore shape.
        B, S, H = x.shape
        y2d = linear_relu_pallas(
            x.reshape(B * S, H), self.w_prepped, self.b_prepped, n_out=H)
        return y2d.reshape(B, S, H)


class ParallelizedWrapper:
    """
    Wrapper to handle model parallelization strategies.
    Actual parallelization is applied elsewhere; this just provides the
    interface — forward() is a pure pass-through to the wrapped model.
    """

    def __init__(self, model):
        self.model = model

    def __call__(self, *args, **kwargs):
        return self.model(*args, **kwargs)


if __name__ == "__main__":
    key = jax.random.PRNGKey(0)
    k_model, k_x = jax.random.split(key)

    B, S, H = 2, 8, 32
    inner = SyntheticInnerModel(H, k_model)
    wrapper = ParallelizedWrapper(inner)

    x = jax.random.normal(k_x, (B, S, H), dtype=jnp.float32)

    out = wrapper(x)
    out = jax.block_until_ready(out)

    # Reference matching the kernel's math (bf16 operands, f32 accumulation).
    cd = jnp.bfloat16
    ref = jnp.maximum(
        jnp.dot(
            x.reshape(B * S, H).astype(cd),
            inner.weight.astype(cd),
            preferred_element_type=jnp.float32,
        )
        + inner.bias,
        0.0,
    ).reshape(B, S, H)

    assert out.shape == (B, S, H)
    assert out.dtype == x.dtype
    max_err = float(jnp.max(jnp.abs(out - ref)))
    assert jnp.allclose(out, ref, atol=1e-2, rtol=1e-2), max_err

    print("KERNEL_OK")
</pallas_src>

<mosaic_0001>
module attributes {stable_mosaic.version = 11 : i64} {
  func.func @_linear_relu_kernel(%arg0: i32, %arg1: i32, %arg2: memref<16x128xbf16, #tpu.memory_space<vmem>>, %arg3: memref<128x128xbf16, #tpu.memory_space<vmem>>, %arg4: memref<1x128xf32, #tpu.memory_space<vmem>>, %arg5: memref<16x128xf32, #tpu.memory_space<vmem>>) attributes {dimension_semantics = [#tpu.dimension_semantics<parallel>, #tpu.dimension_semantics<parallel>], iteration_bounds = array<i64: 1, 1>, scalar_prefetch = 0 : i64, scratch_operands = 0 : i64, tpu.core_type = #tpu.core_type<tc>, window_params = [{transform_indices = @transform_0, window_bounds = array<i64: 16, 128>}, {transform_indices = @transform_1, window_bounds = array<i64: 128, 128>}, {transform_indices = @transform_2, window_bounds = array<i64: 1, 128>}, {transform_indices = @transform_3, window_bounds = array<i64: 16, 128>}]} {
    %c0 = arith.constant 0 : index
    %c0_0 = arith.constant 0 : index
    %0 = vector.load %arg2[%c0, %c0_0] : memref<16x128xbf16, #tpu.memory_space<vmem>>, vector<16x128xbf16>
    %c0_1 = arith.constant 0 : index
    %c0_2 = arith.constant 0 : index
    %1 = vector.load %arg3[%c0_1, %c0_2] : memref<128x128xbf16, #tpu.memory_space<vmem>>, vector<128x128xbf16>
    %cst = arith.constant dense<0.000000e+00> : vector<16x128xf32>
    %2 = tpu.matmul %0, %1, %cst {dimension_numbers = #tpu.dot_dimension_numbers<[1], [0], [0], [1], [0, 0, 1, 1], [], []>} : vector<16x128xbf16>, vector<128x128xbf16>, vector<16x128xf32> -> vector<16x128xf32>
    %c0_3 = arith.constant 0 : index
    %c0_4 = arith.constant 0 : index
    %3 = vector.load %arg4[%c0_3, %c0_4] : memref<1x128xf32, #tpu.memory_space<vmem>>, vector<1x128xf32>
    %4 = vector.broadcast %3 : vector<1x128xf32> to vector<16x128xf32>
    %5 = arith.addf %2, %4 : vector<16x128xf32>
    %cst_5 = arith.constant 0.000000e+00 : f32
    %6 = vector.broadcast %cst_5 : f32 to vector<16x128xf32>
    %7 = arith.maximumf %5, %6 : vector<16x128xf32>
    %c0_6 = arith.constant 0 : index
    %c0_7 = arith.constant 0 : index
    %8 = vector.load %arg5[%c0_6, %c0_7] : memref<16x128xf32, #tpu.memory_space<vmem>>, vector<16x128xf32>
    tpu.vector_store %arg5[%c0_6, %c0_7], %7 {strides = array<i32>} : memref<16x128xf32, #tpu.memory_space<vmem>>, vector<16x128xf32>,
    return
  }
  func.func @transform_0(%arg0: i32, %arg1: i32) -> (i32, i32) {
    %c0_i32 = arith.constant 0 : i32
    %c0_i32_0 = arith.constant 0 : i32
    return %arg1, %c0_i32 : i32, i32
  }
  func.func @transform_1(%arg0: i32, %arg1: i32) -> (i32, i32) {
    %c0_i32 = arith.constant 0 : i32
    %c0_i32_0 = arith.constant 0 : i32
    return %c0_i32, %arg0 : i32, i32
  }
  func.func @transform_2(%arg0: i32, %arg1: i32) -> (i32, i32) {
    %c0_i32 = arith.constant 0 : i32
    %c0_i32_0 = arith.constant 0 : i32
    return %c0_i32, %arg0 : i32, i32
  }
  func.func @transform_3(%arg0: i32, %arg1: i32) -> (i32, i32) {
    %c0_i32 = arith.constant 0 : i32
    return %arg1, %arg0 : i32, i32
  }
}

</mosaic_0001>

<llo_original>
// kernel: linear_relu_pallas.1
$region0: #{linear_relu_pallas.1}
  #allocation0 [shape = 'u32[]', space=smem, size = 0x4, offset = 0x4, fixed_abs, tag = 'smem constant byte address 0x4 - core index']
  #allocation1 [shape = 'u32[144,128]{1,0:T(1,128)}', space=vmem, size = 0x12000, scoped, tag = 'internal scratch']
  %s0 = inlined_call_operand.vmem [shape: bf16[16,128], index: 0, kind: input, shape index: {}]
  %s1 = inlined_call_operand.hbm [shape: bf16[128,128], index: 1, kind: input, shape index: {}]
  %s2 = inlined_call_operand.vmem [shape: f32[1,128], index: 2, kind: input, shape index: {}]
  %s3 = inlined_call_operand.hbm [shape: f32[16,128], index: 3, kind: output, shape index: {}]
  %s4 = sld [smem:[#allocation0]]
  $region26: #{linear_relu_pallas.1} parent=0
    _
  %s6 = ssub.s32 1, %s4
  %s7 = scalar_select 0, %s6, %s4
  $region1: #{linear_relu_pallas.1} parent=0
    #allocation2 [shape = 'u8[32768]{0}', space=vmem, size = 0x8000, scoped, tag = 'input window, operand 1, single buffered']
    #allocation3 [shape = 's32[1]{0}', space=sflag, size = 0x4, scoped, tag = 'scoped memory for linear_relu_pallas.1']
    #allocation4 [shape = 's32[1]{0}', space=sflag, size = 0x4, scoped, tag = 'scoped memory for linear_relu_pallas.1']
    #allocation5 [shape = 'u8[8192]{0}', space=vmem, size = 0x2000, scoped, tag = 'output window, operand 0, single buffered']
    %8 = vsyncpa [#allocation3], 0
    %9 = vsyncpa [#allocation4], 0
    // Predicated region
    $region2: #{linear_relu_pallas.1} parent=1 // pred_check
      _
    $region3: #{linear_relu_pallas.1} parent=1 // pred_check_branch
      %11 = sbr.rel (0) target = $region5
    $region4: #{linear_relu_pallas.1} parent=1 // pred_region
      _
    $region5: #{linear_relu_pallas.1} parent=1 // pred_fallthru
      _
    // Predicated region
    $region6: #{linear_relu_pallas.1} parent=1 // pred_check
      _
    $region7: #{linear_relu_pallas.1} parent=1 // pred_check_branch
      %13 = sbr.rel (0) target = $region9
    $region8: #{linear_relu_pallas.1} parent=1 // pred_region
      %s15 = ssub.s32 1024, 1024
      %16 = vsyncadd [#allocation3], %s15
      %s17 = sshll.u32 [#allocation2], 4
      %s18 = int_to_ptr.vmem [resolvable:$true] %s17
      %23 = dma.hbm_to_vmem [thread:$0]  %s1, 1024, %s18, [#allocation3], 64, 64, 4
    $region9: #{linear_relu_pallas.1} parent=1 // pred_fallthru
      _
    // Predicated region
    $region10: #{linear_relu_pallas.1} parent=1 // pred_check
      _
    $region11: #{linear_relu_pallas.1} parent=1 // pred_check_branch
      %25 = sbr.rel (0) target = $region13
    $region12: #{linear_relu_pallas.1} parent=1 // pred_region
      _
    $region13: #{linear_relu_pallas.1} parent=1 // pred_fallthru
      _
    // Predicated region
    $region14: #{linear_relu_pallas.1} parent=1 // pred_check
      _
    $region15: #{linear_relu_pallas.1} parent=1 // pred_check_branch
      %27 = sbr.rel (0) target = $region17
    $region16: #{linear_relu_pallas.1} parent=1 // pred_region
      %28 = dma.done [#allocation3], 1024
    $region17: #{linear_relu_pallas.1} parent=1 // pred_fallthru
      _
    %v30 = vld [vmem:[%s0] sm:$0xf]
    %v31 = vld [vmem:[%s0 + $0x4] sm:$0xf]
    %v32 = vld [vmem:[#allocation2] sm:$0xf]
    %v33 = vld [vmem:[#allocation2 + $0x4] sm:$0xf]
    %v34 = vld [vmem:[#allocation2 + $0x8] sm:$0xf]
    %v35 = vld [vmem:[#allocation2 + $0xc] sm:$0xf]
    %v36 = vld [vmem:[#allocation2 + $0x10] sm:$0xf]
    %v37 = vld [vmem:[#allocation2 + $0x14] sm:$0xf]
    %v38 = vld [vmem:[#allocation2 + $0x18] sm:$0xf]
    %v39 = vld [vmem:[#allocation2 + $0x1c] sm:$0xf]
    %v40 = vld [vmem:[#allocation2 + $0x20] sm:$0xf]
    %v41 = vld [vmem:[#allocation2 + $0x24] sm:$0xf]
    %v42 = vld [vmem:[#allocation2 + $0x28] sm:$0xf]
    %v43 = vld [vmem:[#allocation2 + $0x2c] sm:$0xf]
    %v44 = vld [vmem:[#allocation2 + $0x30] sm:$0xf]
    %v45 = vld [vmem:[#allocation2 + $0x34] sm:$0xf]
    %v46 = vld [vmem:[#allocation2 + $0x38] sm:$0xf]
    %v47 = vld [vmem:[#allocation2 + $0x3c] sm:$0xf]
    %v48 = vld [vmem:[%s2] sm:$0x1]
    %v50 = vlaneseq
    %v51 = vshrl.u32 %v50, 7
    %v52 = vsub.s32 0, %v51
    %v53 = vrot.slane %v48, %v52
    %v57 = vunpack.c.l.b16 %v30
    %v58 = vunpack.c.l.b16 %v31
    %v59 = vpack.c.b16 %v58, %v57
    %v77 = vunpack.c.l.b16 %v32
    %v78 = vunpack.c.l.b16 %v33
    %v79 = vunpack.c.l.b16 %v34
    %v80 = vunpack.c.l.b16 %v35
    %v81 = vunpack.c.l.b16 %v36
    %v82 = vunpack.c.l.b16 %v37
    %v83 = vunpack.c.l.b16 %v38
    %v84 = vunpack.c.l.b16 %v39
    %v85 = vunpack.c.l.b16 %v40
    %v86 = vunpack.c.l.b16 %v41
    %v87 = vunpack.c.l.b16 %v42
    %v88 = vunpack.c.l.b16 %v43
    %v89 = vunpack.c.l.b16 %v44
    %v90 = vunpack.c.l.b16 %v45
    %v91 = vunpack.c.l.b16 %v46
    %v92 = vunpack.c.l.b16 %v47
    %v93 = vpack.c.b16 %v78, %v77
    %v94 = vpack.c.b16 %v80, %v79
    %v95 = vpack.c.b16 %v82, %v81
    %v96 = vpack.c.b16 %v84, %v83
    %v97 = vpack.c.b16 %v86, %v85
    %v98 = vpack.c.b16 %v88, %v87
    %v99 = vpack.c.b16 %v90, %v89
    %v100 = vpack.c.b16 %v92, %v91
    %109 = vmatprep.subr.bf16.mxu0 0
    %110 = vmatpush1.bf16.msra.mxu0 %v100
    %111 = vmatprep.subr.bf16.mxu0 0
    %112 = vmatpush1.bf16.msra.mxu0 %v99
    %113 = vmatprep.subr.bf16.mxu0 0
    %114 = vmatpush1.bf16.msra.mxu0 %v98
    %115 = vmatprep.subr.bf16.mxu0 0
    %116 = vmatpush1.bf16.msra.mxu0 %v97
    %117 = vmatprep.subr.bf16.mxu0 0
    %118 = vmatpush1.bf16.msra.mxu0 %v96
    %119 = vmatprep.subr.bf16.mxu0 0
    %120 = vmatpush1.bf16.msra.mxu0 %v95
    %121 = vmatprep.subr.bf16.mxu0 0
    %122 = vmatpush1.bf16.msra.mxu0 %v94
    %123 = vmatprep.subr.bf16.mxu0 0
    %124 = vmatpush1.bf16.msra.mxu0 %v93
    %125 = vmatprep.subr.bf16.mxu0 0
    %126 = vmatpush2.bf16.msra.mxu0 0
    %127 = vmatprep.subr.bf16.mxu0 0
    %128 = vmatpush2.bf16.msra.mxu0 0
    %129 = vmatprep.subr.bf16.mxu0 0
    %130 = vmatpush2.bf16.msra.mxu0 0
    %131 = vmatprep.subr.bf16.mxu0 0
    %132 = vmatpush2.bf16.msra.mxu0 0
    %133 = vmatprep.subr.bf16.mxu0 0
    %134 = vmatpush2.bf16.msra.mxu0 0
    %135 = vmatprep.subr.bf16.mxu0 0
    %136 = vmatpush2.bf16.msra.mxu0 0
    %137 = vmatprep.subr.bf16.mxu0 0
    %138 = vmatpush2.bf16.msra.mxu0 0
    %139 = vmatprep.subr.bf16.mxu0 0
    %140 = vmatpush2.bf16.msra.mxu0 0
    %141 = vmatprep.mubr.bf16.mxu0 0
    %142 = vmatmul.mubr.bf16.gmra.mxu0 %v59
    %v143 = vpop.f32.mrf.mxu0
    %v144 = vadd.f32 %v53, %v143
    %v145 = vpop.f32.mrf.mxu0
    %v146 = vpop.f32.mrf.mxu0
    %v147 = vadd.f32 %v53, %v146
    %v148 = vpop.f32.mrf.mxu0
    %149 = vdwg.mxu0
    %v150 = vmax.f32 %v144, 0.0
    %v151 = vmax.f32 %v147, 0.0
    %152 = vst [vmem:[#allocation5] sm:$0xff] %v150
    %153 = vst [vmem:[#allocation5 + $0x8] sm:$0xff] %v151
    // Predicated region
    $region18: #{linear_relu_pallas.1} parent=1 // pred_check
      _
    $region19: #{linear_relu_pallas.1} parent=1 // pred_check_branch
      %155 = sbr.rel (0) target = $region21
    $region20: #{linear_relu_pallas.1} parent=1 // pred_region
      %s157 = ssub.s32 256, 256
      %158 = vsyncadd [#allocation4], %s157
      %s159 = sshll.u32 [#allocation5], 4
      %s160 = int_to_ptr.vmem [resolvable:$true] %s159
      %165 = dma.vmem_to_hbm [thread:$0]  %s160, 256, %s3, [#allocation4], 128, 128, 8
    $region21: #{linear_relu_pallas.1} parent=1 // pred_fallthru
      _
    // Predicated region
    $region22: #{linear_relu_pallas.1} parent=1 // pred_check
      _
    $region23: #{linear_relu_pallas.1} parent=1 // pred_check_branch
      %167 = sbr.rel (0) target = $region25
    $region24: #{linear_relu_pallas.1} parent=1 // pred_region
      %168 = dma.done [#allocation4], 256
    $region25: #{linear_relu_pallas.1} parent=1 // pred_fallthru
      _
    %169 = vsyncpa [#allocation3], 1
    %170 = vsyncpa [#allocation4], 1

</llo_original>
